<compile_context>
chip_gen: v5e
topology: v5e:2x2
jax: 0.10.0
libtpu: 0.0.40
codegen_flags: <defaults>
</compile_context>

<pallas_src>
import functools

import jax
import jax.numpy as jnp
from jax.experimental import pallas as pl
from jax.experimental.pallas import tpu as pltpu


def _ctx_emb_kernel(vg, va, ids_ref, tbl_ref, out_ref):
    """ids_ref: (2, TN) int32; tbl_ref: (D, Vg+Va) f32; out_ref: (D, TN)."""
    gid = ids_ref[0:1, :]          # (1, TN) gender ids (lane axis = batch)
    aid = ids_ref[1:2, :]          # (1, TN) age ids
    tbl = tbl_ref[...]             # (D, Vg+Va) block-diagonal, feature-major

    acc = jnp.zeros(out_ref.shape, jnp.float32)   # (D, TN)

    # Select-accumulate chain over the tiny static vocab (unrolled at trace
    # time).  Each step: (1,TN) compare broadcast against a (D,1) table column.
    for v in range(vg):
        acc = acc + jnp.where(gid == v, tbl[:, v:v + 1], 0.0)
    for v in range(va):
        acc = acc + jnp.where(aid == v, tbl[:, vg + v:vg + v + 1], 0.0)

    out_ref[...] = acc.astype(out_ref.dtype)      # single full-lane store


def make_context_embedding_table(gender_table, age_table):
    """Hoisted init-time step: build the transposed block-diagonal table.

    Returns a (Dg+Da, Vg+Va) f32 table: gender columns 0:Vg fill rows 0:Dg,
    age columns Vg: fill rows Dg:.  Build ONCE (module init), reuse per call.
    """
    vg, dg = gender_table.shape
    va, da = age_table.shape
    combined_t = jnp.zeros((dg + da, vg + va), jnp.float32)
    combined_t = combined_t.at[:dg, :vg].set(gender_table.astype(jnp.float32).T)
    combined_t = combined_t.at[dg:, vg:].set(age_table.astype(jnp.float32).T)
    return combined_t


def context_embedding(context_tokens, combined_t, vg, va, *,
                      out_dtype=jnp.float32, force_pallas=False):
    """context_tokens: (B, 2) int32 (col 0 gender, col 1 age). Returns (B, D)."""
    B = context_tokens.shape[0]
    D, V = combined_t.shape
    assert V == vg + va

    if not force_pallas and B < 4096:
        # Small-B fast path: a fused XLA gather beats a pallas_call launch at
        # microsecond scale and fuses into downstream ops.
        gid = context_tokens[:, 0].astype(jnp.int32)
        aid = context_tokens[:, 1].astype(jnp.int32) + vg
        out = jnp.take(combined_t, gid, axis=1) + jnp.take(combined_t, aid, axis=1)
        return out.T.astype(out_dtype)

    # Layout plumbing in the wrapper: batch onto the lane axis.
    ids = context_tokens.T.astype(jnp.int32)        # (2, B)

    # Lane-tile selection: whole batch (block == full array) for small B,
    # otherwise a 128-multiple tile, shrunk until the grid has >=2 steps so
    # both v7x TensorCores get work.  Per-step VMEM is tiny (~0.5 MiB at
    # TN=8192 double-buffered), no vmem_limit_bytes needed.
    if B <= 1024:
        TN = B
    else:
        TN = 8192
        while TN > 128 and pl.cdiv(B, TN) < 2:
            TN //= 2
    grid = (pl.cdiv(B, TN),)

    kernel = functools.partial(_ctx_emb_kernel, vg, va)

    out_t = pl.pallas_call(
        kernel,
        out_shape=jax.ShapeDtypeStruct((D, B), out_dtype),
        grid_spec=pltpu.PrefetchScalarGridSpec(
            num_scalar_prefetch=0,
            grid=grid,
            in_specs=[
                pl.BlockSpec((2, TN), lambda i: (0, i)),   # merged ids
                pl.BlockSpec((D, V), lambda i: (0, 0)),    # table, resident
            ],
            out_specs=pl.BlockSpec((D, TN), lambda i: (0, i)),
        ),
        compiler_params=pltpu.CompilerParams(
            dimension_semantics=("parallel",)),
    )(ids, combined_t)

    # Transpose back to the module's (B, D) contract (pure layout plumbing).
    return out_t.T


if __name__ == "__main__":
    # Module config (context_vocab_sizes=[age_vocab, gender_vocab], d_model unused).
    age_vocab, gender_vocab = 10, 3
    Dg, Da = 2, 4

    key = jax.random.PRNGKey(0)
    k_age, k_gender, k_g_ids, k_a_ids = jax.random.split(key, 4)

    # Deterministic "parameters" (nn.Embedding weights ~ N(0,1)).
    age_table = jax.random.normal(k_age, (age_vocab, Da), dtype=jnp.float32)
    gender_table = jax.random.normal(k_gender, (gender_vocab, Dg), dtype=jnp.float32)
    # home_emb / work_emb are nn.Embedding(0, 0): zero-sized, unused in forward.

    # Init-time (hoisted) table construction.
    combined_t = make_context_embedding_table(gender_table, age_table)

    def reference(tokens):
        return jnp.concatenate(
            [jnp.take(gender_table, tokens[:, 0], axis=0),
             jnp.take(age_table, tokens[:, 1], axis=0)],
            axis=-1,
        )

    ok = True
    for B in (8, 2048):   # small single-step case + multi-step grid case
        kg, ka = jax.random.split(jax.random.fold_in(key, B))
        gender_ids = jax.random.randint(kg, (B, 1), 0, gender_vocab, dtype=jnp.int32)
        age_ids = jax.random.randint(ka, (B, 1), 0, age_vocab, dtype=jnp.int32)
        context_tokens = jnp.concatenate([gender_ids, age_ids], axis=1)   # (B, 2)

        out = context_embedding(context_tokens, combined_t,
                                gender_vocab, age_vocab, force_pallas=True)
        out = jax.block_until_ready(out)

        ref = reference(context_tokens)
        ok &= out.shape == (B, Dg + Da)
        ok &= bool(jnp.allclose(out, ref, atol=1e-6))

    assert ok, "mismatch vs reference"
    print("KERNEL_OK")
</pallas_src>

<mosaic_0001>
module attributes {stable_mosaic.version = 11 : i64} {
  func.func @_ctx_emb_kernel(%arg0: i32, %arg1: memref<2x8xi32, #tpu.memory_space<vmem>>, %arg2: memref<6x13xf32, #tpu.memory_space<vmem>>, %arg3: memref<6x8xf32, #tpu.memory_space<vmem>>) attributes {dimension_semantics = [#tpu.dimension_semantics<parallel>], iteration_bounds = array<i64: 1>, scalar_prefetch = 0 : i64, scratch_operands = 0 : i64, tpu.core_type = #tpu.core_type<tc>, window_params = [{transform_indices = @transform_0, window_bounds = array<i64: 2, 8>}, {pipeline_mode = #tpu.pipeline_mode<synchronous>, transform_indices = @transform_1, window_bounds = array<i64: 6, 13>}, {transform_indices = @transform_2, window_bounds = array<i64: 6, 8>}]} {
    %c0 = arith.constant 0 : index
    %c0_0 = arith.constant 0 : index
    %0 = vector.load %arg1[%c0, %c0_0] : memref<2x8xi32, #tpu.memory_space<vmem>>, vector<1x8xi32>
    %c1 = arith.constant 1 : index
    %c0_1 = arith.constant 0 : index
    %1 = vector.load %arg1[%c1, %c0_1] : memref<2x8xi32, #tpu.memory_space<vmem>>, vector<1x8xi32>
    %c0_2 = arith.constant 0 : index
    %c0_3 = arith.constant 0 : index
    %2 = vector.load %arg2[%c0_2, %c0_3] : memref<6x13xf32, #tpu.memory_space<vmem>>, vector<6x13xf32>
    %cst = arith.constant 0.000000e+00 : f32
    %3 = vector.broadcast %cst : f32 to vector<6x8xf32>
    %c0_i32 = arith.constant 0 : i32
    %4 = vector.broadcast %c0_i32 : i32 to vector<1x8xi32>
    %5 = arith.cmpi eq, %0, %4 : vector<1x8xi32>
    %6 = vector.extract_strided_slice %2 {offsets = [0, 0], sizes = [6, 1], strides = [1, 1]} : vector<6x13xf32> to vector<6x1xf32>
    %cst_4 = arith.constant 0.000000e+00 : f32
    %7 = vector.shape_cast %5 : vector<1x8xi1> to vector<1x8xi1>
    %8 = vector.broadcast %7 : vector<1x8xi1> to vector<6x8xi1>
    %9 = vector.shape_cast %6 : vector<6x1xf32> to vector<6x1xf32>
    %10 = vector.broadcast %9 : vector<6x1xf32> to vector<6x8xf32>
    %11 = vector.broadcast %cst_4 : f32 to vector<6x8xf32>
    %12 = arith.select %8, %10, %11 : vector<6x8xi1>, vector<6x8xf32>
    %13 = arith.addf %3, %12 : vector<6x8xf32>
    %c1_i32 = arith.constant 1 : i32
    %14 = vector.broadcast %c1_i32 : i32 to vector<1x8xi32>
    %15 = arith.cmpi eq, %0, %14 : vector<1x8xi32>
    %16 = vector.extract_strided_slice %2 {offsets = [0, 1], sizes = [6, 1], strides = [1, 1]} : vector<6x13xf32> to vector<6x1xf32>
    %cst_5 = arith.constant 0.000000e+00 : f32
    %17 = vector.shape_cast %15 : vector<1x8xi1> to vector<1x8xi1>
    %18 = vector.broadcast %17 : vector<1x8xi1> to vector<6x8xi1>
    %19 = vector.shape_cast %16 : vector<6x1xf32> to vector<6x1xf32>
    %20 = vector.broadcast %19 : vector<6x1xf32> to vector<6x8xf32>
    %21 = vector.broadcast %cst_5 : f32 to vector<6x8xf32>
    %22 = arith.select %18, %20, %21 : vector<6x8xi1>, vector<6x8xf32>
    %23 = arith.addf %13, %22 : vector<6x8xf32>
    %c2_i32 = arith.constant 2 : i32
    %24 = vector.broadcast %c2_i32 : i32 to vector<1x8xi32>
    %25 = arith.cmpi eq, %0, %24 : vector<1x8xi32>
    %26 = vector.extract_strided_slice %2 {offsets = [0, 2], sizes = [6, 1], strides = [1, 1]} : vector<6x13xf32> to vector<6x1xf32>
    %cst_6 = arith.constant 0.000000e+00 : f32
    %27 = vector.shape_cast %25 : vector<1x8xi1> to vector<1x8xi1>
    %28 = vector.broadcast %27 : vector<1x8xi1> to vector<6x8xi1>
    %29 = vector.shape_cast %26 : vector<6x1xf32> to vector<6x1xf32>
    %30 = vector.broadcast %29 : vector<6x1xf32> to vector<6x8xf32>
    %31 = vector.broadcast %cst_6 : f32 to vector<6x8xf32>
    %32 = arith.select %28, %30, %31 : vector<6x8xi1>, vector<6x8xf32>
    %33 = arith.addf %23, %32 : vector<6x8xf32>
    %c0_i32_7 = arith.constant 0 : i32
    %34 = vector.broadcast %c0_i32_7 : i32 to vector<1x8xi32>
    %35 = arith.cmpi eq, %1, %34 : vector<1x8xi32>
    %36 = vector.extract_strided_slice %2 {offsets = [0, 3], sizes = [6, 1], strides = [1, 1]} : vector<6x13xf32> to vector<6x1xf32>
    %cst_8 = arith.constant 0.000000e+00 : f32
    %37 = vector.shape_cast %35 : vector<1x8xi1> to vector<1x8xi1>
    %38 = vector.broadcast %37 : vector<1x8xi1> to vector<6x8xi1>
    %39 = vector.shape_cast %36 : vector<6x1xf32> to vector<6x1xf32>
    %40 = vector.broadcast %39 : vector<6x1xf32> to vector<6x8xf32>
    %41 = vector.broadcast %cst_8 : f32 to vector<6x8xf32>
    %42 = arith.select %38, %40, %41 : vector<6x8xi1>, vector<6x8xf32>
    %43 = arith.addf %33, %42 : vector<6x8xf32>
    %c1_i32_9 = arith.constant 1 : i32
    %44 = vector.broadcast %c1_i32_9 : i32 to vector<1x8xi32>
    %45 = arith.cmpi eq, %1, %44 : vector<1x8xi32>
    %46 = vector.extract_strided_slice %2 {offsets = [0, 4], sizes = [6, 1], strides = [1, 1]} : vector<6x13xf32> to vector<6x1xf32>
    %cst_10 = arith.constant 0.000000e+00 : f32
    %47 = vector.shape_cast %45 : vector<1x8xi1> to vector<1x8xi1>
    %48 = vector.broadcast %47 : vector<1x8xi1> to vector<6x8xi1>
    %49 = vector.shape_cast %46 : vector<6x1xf32> to vector<6x1xf32>
    %50 = vector.broadcast %49 : vector<6x1xf32> to vector<6x8xf32>
    %51 = vector.broadcast %cst_10 : f32 to vector<6x8xf32>
    %52 = arith.select %48, %50, %51 : vector<6x8xi1>, vector<6x8xf32>
    %53 = arith.addf %43, %52 : vector<6x8xf32>
    %c2_i32_11 = arith.constant 2 : i32
    %54 = vector.broadcast %c2_i32_11 : i32 to vector<1x8xi32>
    %55 = arith.cmpi eq, %1, %54 : vector<1x8xi32>
    %56 = vector.extract_strided_slice %2 {offsets = [0, 5], sizes = [6, 1], strides = [1, 1]} : vector<6x13xf32> to vector<6x1xf32>
    %cst_12 = arith.constant 0.000000e+00 : f32
    %57 = vector.shape_cast %55 : vector<1x8xi1> to vector<1x8xi1>
    %58 = vector.broadcast %57 : vector<1x8xi1> to vector<6x8xi1>
    %59 = vector.shape_cast %56 : vector<6x1xf32> to vector<6x1xf32>
    %60 = vector.broadcast %59 : vector<6x1xf32> to vector<6x8xf32>
    %61 = vector.broadcast %cst_12 : f32 to vector<6x8xf32>
    %62 = arith.select %58, %60, %61 : vector<6x8xi1>, vector<6x8xf32>
    %63 = arith.addf %53, %62 : vector<6x8xf32>
    %c3_i32 = arith.constant 3 : i32
    %64 = vector.broadcast %c3_i32 : i32 to vector<1x8xi32>
    %65 = arith.cmpi eq, %1, %64 : vector<1x8xi32>
    %66 = vector.extract_strided_slice %2 {offsets = [0, 6], sizes = [6, 1], strides = [1, 1]} : vector<6x13xf32> to vector<6x1xf32>
    %cst_13 = arith.constant 0.000000e+00 : f32
    %67 = vector.shape_cast %65 : vector<1x8xi1> to vector<1x8xi1>
    %68 = vector.broadcast %67 : vector<1x8xi1> to vector<6x8xi1>
    %69 = vector.shape_cast %66 : vector<6x1xf32> to vector<6x1xf32>
    %70 = vector.broadcast %69 : vector<6x1xf32> to vector<6x8xf32>
    %71 = vector.broadcast %cst_13 : f32 to vector<6x8xf32>
    %72 = arith.select %68, %70, %71 : vector<6x8xi1>, vector<6x8xf32>
    %73 = arith.addf %63, %72 : vector<6x8xf32>
    %c4_i32 = arith.constant 4 : i32
    %74 = vector.broadcast %c4_i32 : i32 to vector<1x8xi32>
    %75 = arith.cmpi eq, %1, %74 : vector<1x8xi32>
    %76 = vector.extract_strided_slice %2 {offsets = [0, 7], sizes = [6, 1], strides = [1, 1]} : vector<6x13xf32> to vector<6x1xf32>
    %cst_14 = arith.constant 0.000000e+00 : f32
    %77 = vector.shape_cast %75 : vector<1x8xi1> to vector<1x8xi1>
    %78 = vector.broadcast %77 : vector<1x8xi1> to vector<6x8xi1>
    %79 = vector.shape_cast %76 : vector<6x1xf32> to vector<6x1xf32>
    %80 = vector.broadcast %79 : vector<6x1xf32> to vector<6x8xf32>
    %81 = vector.broadcast %cst_14 : f32 to vector<6x8xf32>
    %82 = arith.select %78, %80, %81 : vector<6x8xi1>, vector<6x8xf32>
    %83 = arith.addf %73, %82 : vector<6x8xf32>
    %c5_i32 = arith.constant 5 : i32
    %84 = vector.broadcast %c5_i32 : i32 to vector<1x8xi32>
    %85 = arith.cmpi eq, %1, %84 : vector<1x8xi32>
    %86 = vector.extract_strided_slice %2 {offsets = [0, 8], sizes = [6, 1], strides = [1, 1]} : vector<6x13xf32> to vector<6x1xf32>
    %cst_15 = arith.constant 0.000000e+00 : f32
    %87 = vector.shape_cast %85 : vector<1x8xi1> to vector<1x8xi1>
    %88 = vector.broadcast %87 : vector<1x8xi1> to vector<6x8xi1>
    %89 = vector.shape_cast %86 : vector<6x1xf32> to vector<6x1xf32>
    %90 = vector.broadcast %89 : vector<6x1xf32> to vector<6x8xf32>
    %91 = vector.broadcast %cst_15 : f32 to vector<6x8xf32>
    %92 = arith.select %88, %90, %91 : vector<6x8xi1>, vector<6x8xf32>
    %93 = arith.addf %83, %92 : vector<6x8xf32>
    %c6_i32 = arith.constant 6 : i32
    %94 = vector.broadcast %c6_i32 : i32 to vector<1x8xi32>
    %95 = arith.cmpi eq, %1, %94 : vector<1x8xi32>
    %96 = vector.extract_strided_slice %2 {offsets = [0, 9], sizes = [6, 1], strides = [1, 1]} : vector<6x13xf32> to vector<6x1xf32>
    %cst_16 = arith.constant 0.000000e+00 : f32
    %97 = vector.shape_cast %95 : vector<1x8xi1> to vector<1x8xi1>
    %98 = vector.broadcast %97 : vector<1x8xi1> to vector<6x8xi1>
    %99 = vector.shape_cast %96 : vector<6x1xf32> to vector<6x1xf32>
    %100 = vector.broadcast %99 : vector<6x1xf32> to vector<6x8xf32>
    %101 = vector.broadcast %cst_16 : f32 to vector<6x8xf32>
    %102 = arith.select %98, %100, %101 : vector<6x8xi1>, vector<6x8xf32>
    %103 = arith.addf %93, %102 : vector<6x8xf32>
    %c7_i32 = arith.constant 7 : i32
    %104 = vector.broadcast %c7_i32 : i32 to vector<1x8xi32>
    %105 = arith.cmpi eq, %1, %104 : vector<1x8xi32>
    %106 = vector.extract_strided_slice %2 {offsets = [0, 10], sizes = [6, 1], strides = [1, 1]} : vector<6x13xf32> to vector<6x1xf32>
    %cst_17 = arith.constant 0.000000e+00 : f32
    %107 = vector.shape_cast %105 : vector<1x8xi1> to vector<1x8xi1>
    %108 = vector.broadcast %107 : vector<1x8xi1> to vector<6x8xi1>
    %109 = vector.shape_cast %106 : vector<6x1xf32> to vector<6x1xf32>
    %110 = vector.broadcast %109 : vector<6x1xf32> to vector<6x8xf32>
    %111 = vector.broadcast %cst_17 : f32 to vector<6x8xf32>
    %112 = arith.select %108, %110, %111 : vector<6x8xi1>, vector<6x8xf32>
    %113 = arith.addf %103, %112 : vector<6x8xf32>
    %c8_i32 = arith.constant 8 : i32
    %114 = vector.broadcast %c8_i32 : i32 to vector<1x8xi32>
    %115 = arith.cmpi eq, %1, %114 : vector<1x8xi32>
    %116 = vector.extract_strided_slice %2 {offsets = [0, 11], sizes = [6, 1], strides = [1, 1]} : vector<6x13xf32> to vector<6x1xf32>
    %cst_18 = arith.constant 0.000000e+00 : f32
    %117 = vector.shape_cast %115 : vector<1x8xi1> to vector<1x8xi1>
    %118 = vector.broadcast %117 : vector<1x8xi1> to vector<6x8xi1>
    %119 = vector.shape_cast %116 : vector<6x1xf32> to vector<6x1xf32>
    %120 = vector.broadcast %119 : vector<6x1xf32> to vector<6x8xf32>
    %121 = vector.broadcast %cst_18 : f32 to vector<6x8xf32>
    %122 = arith.select %118, %120, %121 : vector<6x8xi1>, vector<6x8xf32>
    %123 = arith.addf %113, %122 : vector<6x8xf32>
    %c9_i32 = arith.constant 9 : i32
    %124 = vector.broadcast %c9_i32 : i32 to vector<1x8xi32>
    %125 = arith.cmpi eq, %1, %124 : vector<1x8xi32>
    %126 = vector.extract_strided_slice %2 {offsets = [0, 12], sizes = [6, 1], strides = [1, 1]} : vector<6x13xf32> to vector<6x1xf32>
    %cst_19 = arith.constant 0.000000e+00 : f32
    %127 = vector.shape_cast %125 : vector<1x8xi1> to vector<1x8xi1>
    %128 = vector.broadcast %127 : vector<1x8xi1> to vector<6x8xi1>
    %129 = vector.shape_cast %126 : vector<6x1xf32> to vector<6x1xf32>
    %130 = vector.broadcast %129 : vector<6x1xf32> to vector<6x8xf32>
    %131 = vector.broadcast %cst_19 : f32 to vector<6x8xf32>
    %132 = arith.select %128, %130, %131 : vector<6x8xi1>, vector<6x8xf32>
    %133 = arith.addf %123, %132 : vector<6x8xf32>
    %c0_20 = arith.constant 0 : index
    %c0_21 = arith.constant 0 : index
    %134 = vector.load %arg3[%c0_20, %c0_21] : memref<6x8xf32, #tpu.memory_space<vmem>>, vector<6x8xf32>
    tpu.vector_store %arg3[%c0_20, %c0_21], %133 {strides = array<i32>} : memref<6x8xf32, #tpu.memory_space<vmem>>, vector<6x8xf32>,
    return
  }
  func.func @transform_0(%arg0: i32) -> (i32, i32) {
    %c0_i32 = arith.constant 0 : i32
    %c0_i32_0 = arith.constant 0 : i32
    return %c0_i32, %arg0 : i32, i32
  }
  func.func @transform_1(%arg0: i32) -> (i32, i32) {
    %c0_i32 = arith.constant 0 : i32
    %c0_i32_0 = arith.constant 0 : i32
    %c0_i32_1 = arith.constant 0 : i32
    return %c0_i32, %c0_i32_0 : i32, i32
  }
  func.func @transform_2(%arg0: i32) -> (i32, i32) {
    %c0_i32 = arith.constant 0 : i32
    %c0_i32_0 = arith.constant 0 : i32
    return %c0_i32, %arg0 : i32, i32
  }
}

</mosaic_0001>

<llo_original>
// kernel: tpu_custom_call.1
$region0: #{tpu_custom_call.1}
  #allocation0 [shape = 'u32[]', space=smem, size = 0x4, offset = 0x4, fixed_abs, tag = 'smem constant byte address 0x4 - core index']
  #allocation1 [shape = 'u32[72,128]{1,0:T(1,128)}', space=vmem, size = 0x9000, scoped, tag = 'internal scratch']
  %s0 = inlined_call_operand.hbm [shape: s32[2,8], index: 0, kind: input, shape index: {}]
  %s1 = inlined_call_operand.hbm [shape: f32[6,13], index: 1, kind: input, shape index: {}]
  %s2 = inlined_call_operand.hbm [shape: f32[6,8], index: 2, kind: output, shape index: {}]
  %s3 = sld [smem:[#allocation0]]
  $region26: #{tpu_custom_call.1} parent=0
    _
  %s5 = ssub.s32 1, %s3
  %s6 = scalar_select 0, %s5, %s3
  $region1: #{tpu_custom_call.1} parent=0
    #allocation2 [shape = 'u8[1024]{0}', space=vmem, size = 0x400, scoped, tag = 'input window, operand 0, single buffered']
    #allocation3 [shape = 's32[1]{0}', space=sflag, size = 0x4, scoped, tag = 'scoped memory for tpu_custom_call.1']
    #allocation4 [shape = 's32[1]{0}', space=sflag, size = 0x4, scoped, tag = 'scoped memory for tpu_custom_call.1']
    #allocation5 [shape = 'u8[4096]{0}', space=vmem, size = 0x1000, scoped, tag = 'input window, operand 1, single buffered']
    #allocation6 [shape = 's32[1]{0}', space=sflag, size = 0x4, scoped, tag = 'scoped memory for tpu_custom_call.1']
    #allocation7 [shape = 'u8[4096]{0}', space=vmem, size = 0x1000, scoped, tag = 'output window, operand 0, single buffered']
    %7 = vsyncpa [#allocation3], 0
    %8 = vsyncpa [#allocation6], 0
    %9 = vsyncpa [#allocation4], 0
    // Predicated region
    $region2: #{tpu_custom_call.1} parent=1 // pred_check
      _
    $region3: #{tpu_custom_call.1} parent=1 // pred_check_branch
      %11 = sbr.rel (0) target = $region5
    $region4: #{tpu_custom_call.1} parent=1 // pred_region
      %13 = vsyncadd [#allocation3], 0
      %s15 = sshll.u32 %s0, 4
      %s16 = int_to_ptr.hbm [resolvable:$true] %s15
      %s17 = sshll.u32 [#allocation2], 4
      %s18 = int_to_ptr.vmem [resolvable:$true] %s17
      %20 = dma.hbm_to_vmem [thread:$0]  %s16, 32, %s18, [#allocation3]
    $region5: #{tpu_custom_call.1} parent=1 // pred_fallthru
      _
    // Predicated region
    $region6: #{tpu_custom_call.1} parent=1 // pred_check
      _
    $region7: #{tpu_custom_call.1} parent=1 // pred_check_branch
      %22 = sbr.rel (0) target = $region9
    $region8: #{tpu_custom_call.1} parent=1 // pred_region
      %24 = vsyncadd [#allocation6], 0
      %s26 = sshll.u32 %s1, 4
      %s27 = int_to_ptr.hbm [resolvable:$true] %s26
      %s28 = sshll.u32 [#allocation5], 4
      %s29 = int_to_ptr.vmem [resolvable:$true] %s28
      %31 = dma.hbm_to_vmem [thread:$0]  %s27, 128, %s29, [#allocation6]
    $region9: #{tpu_custom_call.1} parent=1 // pred_fallthru
      _
    // Predicated region
    $region10: #{tpu_custom_call.1} parent=1 // pred_check
      _
    $region11: #{tpu_custom_call.1} parent=1 // pred_check_branch
      %33 = sbr.rel (0) target = $region13
    $region12: #{tpu_custom_call.1} parent=1 // pred_region
      %35 = dma.done [#allocation3], 32
    $region13: #{tpu_custom_call.1} parent=1 // pred_fallthru
      _
    // Predicated region
    $region14: #{tpu_custom_call.1} parent=1 // pred_check
      _
    $region15: #{tpu_custom_call.1} parent=1 // pred_check_branch
      %37 = sbr.rel (0) target = $region17
    $region16: #{tpu_custom_call.1} parent=1 // pred_region
      %39 = dma.done [#allocation6], 128
    $region17: #{tpu_custom_call.1} parent=1 // pred_fallthru
      _
    %v40 = vld [vmem:[#allocation2] sm:$0x1]
    %v41 = vld [vmem:[#allocation2 + $0x1] sm:$0x1]
    %v42 = vld [vmem:[#allocation5] sm:$0x3f]
    %vm43 = vcmp.eq.s32.totalorder %v40, 0
    %v44 = vsel %vm43, 1, 0
    %v45 = vperm.slane %v44, 0
    %vm46 = vcmp.eq.s32.totalorder %v45, 1
    %48 = vset.pattern.permute.xlu0 0
    %49 = vperm.xlu0 %48, %v42
    %v50 = vpop.permute.xlu0 %49
    %v52 = vsel %vm46, %v50, 0.0
    %v53 = vadd.f32 %v52, 0.0
    %vm54 = vcmp.eq.s32.totalorder %v40, 1
    %v55 = vsel %vm54, 1, 0
    %v56 = vperm.slane %v55, 0
    %vm57 = vcmp.eq.s32.totalorder %v56, 1
    %58 = vset.pattern.permute.xlu0 1
    %59 = vperm.xlu0 %58, %v42
    %v60 = vpop.permute.xlu0 %59
    %v62 = vsel %vm57, %v60, 0.0
    %v63 = vadd.f32 %v53, %v62
    %vm64 = vcmp.eq.s32.totalorder %v40, 2
    %v65 = vsel %vm64, 1, 0
    %v66 = vperm.slane %v65, 0
    %vm67 = vcmp.eq.s32.totalorder %v66, 1
    %68 = vset.pattern.permute.xlu0 2
    %69 = vperm.xlu0 %68, %v42
    %v70 = vpop.permute.xlu0 %69
    %v72 = vsel %vm67, %v70, 0.0
    %v73 = vadd.f32 %v63, %v72
    %vm74 = vcmp.eq.s32.totalorder %v41, 0
    %v75 = vsel %vm74, 1, 0
    %v76 = vperm.slane %v75, 0
    %vm77 = vcmp.eq.s32.totalorder %v76, 1
    %78 = vset.pattern.permute.xlu0 3
    %79 = vperm.xlu0 %78, %v42
    %v80 = vpop.permute.xlu0 %79
    %v82 = vsel %vm77, %v80, 0.0
    %v83 = vadd.f32 %v73, %v82
    %vm84 = vcmp.eq.s32.totalorder %v41, 1
    %v85 = vsel %vm84, 1, 0
    %v86 = vperm.slane %v85, 0
    %vm87 = vcmp.eq.s32.totalorder %v86, 1
    %88 = vset.pattern.permute.xlu0 4
    %89 = vperm.xlu0 %88, %v42
    %v90 = vpop.permute.xlu0 %89
    %v92 = vsel %vm87, %v90, 0.0
    %v93 = vadd.f32 %v83, %v92
    %vm94 = vcmp.eq.s32.totalorder %v41, 2
    %v95 = vsel %vm94, 1, 0
    %v96 = vperm.slane %v95, 0
    %vm97 = vcmp.eq.s32.totalorder %v96, 1
    %98 = vset.pattern.permute.xlu0 5
    %99 = vperm.xlu0 %98, %v42
    %v100 = vpop.permute.xlu0 %99
    %v102 = vsel %vm97, %v100, 0.0
    %v103 = vadd.f32 %v93, %v102
    %vm104 = vcmp.eq.s32.totalorder %v41, 3
    %v105 = vsel %vm104, 1, 0
    %v106 = vperm.slane %v105, 0
    %vm107 = vcmp.eq.s32.totalorder %v106, 1
    %108 = vset.pattern.permute.xlu0 6
    %109 = vperm.xlu0 %108, %v42
    %v110 = vpop.permute.xlu0 %109
    %v112 = vsel %vm107, %v110, 0.0
    %v113 = vadd.f32 %v103, %v112
    %vm114 = vcmp.eq.s32.totalorder %v41, 4
    %v115 = vsel %vm114, 1, 0
    %v116 = vperm.slane %v115, 0
    %vm117 = vcmp.eq.s32.totalorder %v116, 1
    %118 = vset.pattern.permute.xlu0 7
    %119 = vperm.xlu0 %118, %v42
    %v120 = vpop.permute.xlu0 %119
    %v122 = vsel %vm117, %v120, 0.0
    %v123 = vadd.f32 %v113, %v122
    %vm124 = vcmp.eq.s32.totalorder %v41, 5
    %v125 = vsel %vm124, 1, 0
    %v126 = vperm.slane %v125, 0
    %vm127 = vcmp.eq.s32.totalorder %v126, 1
    %128 = vset.pattern.permute.xlu0 8
    %129 = vperm.xlu0 %128, %v42
    %v130 = vpop.permute.xlu0 %129
    %v132 = vsel %vm127, %v130, 0.0
    %v133 = vadd.f32 %v123, %v132
    %vm134 = vcmp.eq.s32.totalorder %v41, 6
    %v135 = vsel %vm134, 1, 0
    %v136 = vperm.slane %v135, 0
    %vm137 = vcmp.eq.s32.totalorder %v136, 1
    %138 = vset.pattern.permute.xlu0 9
    %139 = vperm.xlu0 %138, %v42
    %v140 = vpop.permute.xlu0 %139
    %v142 = vsel %vm137, %v140, 0.0
    %v143 = vadd.f32 %v133, %v142
    %vm144 = vcmp.eq.s32.totalorder %v41, 7
    %v145 = vsel %vm144, 1, 0
    %v146 = vperm.slane %v145, 0
    %vm147 = vcmp.eq.s32.totalorder %v146, 1
    %148 = vset.pattern.permute.xlu0 10
    %149 = vperm.xlu0 %148, %v42
    %v150 = vpop.permute.xlu0 %149
    %v152 = vsel %vm147, %v150, 0.0
    %v153 = vadd.f32 %v143, %v152
    %vm154 = vcmp.eq.s32.totalorder %v41, 8
    %v155 = vsel %vm154, 1, 0
    %v156 = vperm.slane %v155, 0
    %vm157 = vcmp.eq.s32.totalorder %v156, 1
    %158 = vset.pattern.permute.xlu0 11
    %159 = vperm.xlu0 %158, %v42
    %v160 = vpop.permute.xlu0 %159
    %v162 = vsel %vm157, %v160, 0.0
    %v163 = vadd.f32 %v153, %v162
    %vm164 = vcmp.eq.s32.totalorder %v41, 9
    %v165 = vsel %vm164, 1, 0
    %v166 = vperm.slane %v165, 0
    %vm167 = vcmp.eq.s32.totalorder %v166, 1
    %168 = vset.pattern.permute.xlu0 12
    %169 = vperm.xlu0 %168, %v42
    %v170 = vpop.permute.xlu0 %169
    %v172 = vsel %vm167, %v170, 0.0
    %v173 = vadd.f32 %v163, %v172
    %vm174 = vcmask 62464
    %175 = vst.msk [vmem:[#allocation7] sm:$0x3f] %vm174, %v173
    // Predicated region
    $region18: #{tpu_custom_call.1} parent=1 // pred_check
      _
    $region19: #{tpu_custom_call.1} parent=1 // pred_check_branch
      %177 = sbr.rel (0) target = $region21
    $region20: #{tpu_custom_call.1} parent=1 // pred_region
      %179 = vsyncadd [#allocation4], 0
      %s181 = sshll.u32 [#allocation7], 4
      %s182 = int_to_ptr.vmem [resolvable:$true] %s181
      %s183 = sshll.u32 %s2, 4
      %s184 = int_to_ptr.hbm [resolvable:$true] %s183
      %186 = dma.vmem_to_hbm [thread:$0]  %s182, 128, %s184, [#allocation4]
    $region21: #{tpu_custom_call.1} parent=1 // pred_fallthru
      _
    // Predicated region
    $region22: #{tpu_custom_call.1} parent=1 // pred_check
      _
    $region23: #{tpu_custom_call.1} parent=1 // pred_check_branch
      %188 = sbr.rel (0) target = $region25
    $region24: #{tpu_custom_call.1} parent=1 // pred_region
      %190 = dma.done [#allocation4], 128
    $region25: #{tpu_custom_call.1} parent=1 // pred_fallthru
      _
    %191 = vsyncpa [#allocation3], 1
    %192 = vsyncpa [#allocation6], 1
    %193 = vsyncpa [#allocation4], 1

</llo_original>
